<compile_context>
chip_gen: v6e
topology: v6e:2x2x1
jax: 0.10.0
libtpu: 0.0.40
codegen_flags: <defaults>
</compile_context>

<pallas_src>
import math

import jax
import jax.numpy as jnp
from jax.experimental import pallas as pl
from jax.experimental.pallas import tpu as pltpu


def _round_up(v, m):
    return ((v + m - 1) // m) * m


# ----------------------------------------------------------------------------
# Path A: degenerate matvec (O == 1) — VPU multiply + sublane reduce, no MXU.
# ----------------------------------------------------------------------------
def _matvec_kernel(xt_ref, wt_ref, b_ref, ot_ref):
    # xt: [Dp, tb]  (batch on lanes), wt: [Dp, 1], b: SMEM scalar, out: [1, tb].
    xt = xt_ref[...].astype(jnp.float32)
    wt = wt_ref[...].astype(jnp.float32)            # lane-broadcast against xt
    acc = jnp.sum(xt * wt, axis=0, keepdims=True)   # sublane reduce -> [1, tb]
    ot_ref[...] = (acc + b_ref[0, 0]).astype(ot_ref.dtype)


def _matvec_forward(x, weight, bias, *, tb=512):
    B, D = x.shape
    # Pad D to a sublane multiple and B to a lane-dense tile multiple; zero
    # padding contributes nothing to the reduction and is sliced off below.
    Dp = _round_up(D, 8)
    tb = min(tb, _round_up(B, 128))
    Bp = _round_up(B, tb)

    xp = jnp.pad(x, ((0, Bp - B), (0, Dp - D))) if (Bp, Dp) != (B, D) else x
    wp = jnp.pad(weight, ((0, 0), (0, Dp - D))) if Dp != D else weight

    # Layout plumbing in the wrapper (XLA): present the transposed problem so
    # the kernel's output last dim is the batch (lane-dense store).
    xt = xp.T                                   # [Dp, Bp]
    wt = wp.T                                   # [Dp, 1]
    b = bias.reshape(1, 1).astype(jnp.float32)  # SMEM scalar

    out_t = pl.pallas_call(
        _matvec_kernel,
        out_shape=jax.ShapeDtypeStruct((1, Bp), x.dtype),
        grid=(Bp // tb,),
        in_specs=[
            pl.BlockSpec((Dp, tb), lambda j: (0, j)),
            pl.BlockSpec((Dp, 1), lambda j: (0, 0)),
            pl.BlockSpec(memory_space=pltpu.MemorySpace.SMEM),  # scalar bias
        ],
        out_specs=pl.BlockSpec((1, tb), lambda j: (0, j)),
        compiler_params=pltpu.CompilerParams(
            dimension_semantics=("parallel",),
        ),
    )(xt, wt, b)
    return out_t[:, :B].T                       # [B, 1]


# ----------------------------------------------------------------------------
# Path B: general tiled MXU matmul (used when the Linear is non-degenerate).
# ----------------------------------------------------------------------------
def _linear_tiled_kernel(x_ref, w_ref, b_ref, o_ref, acc_ref):
    # x: [tm, tk], w (PyTorch layout): [tn, tk], bias: [1, tn], out: [tm, tn].
    k = pl.program_id(2)

    @pl.when(k == 0)
    def _():
        acc_ref[...] = jnp.zeros_like(acc_ref)

    # Contract on the last dim of BOTH operands: no w.T materialized in-kernel.
    acc_ref[...] += jax.lax.dot_general(
        x_ref[...],
        w_ref[...],
        dimension_numbers=(((1,), (1,)), ((), ())),
        preferred_element_type=jnp.float32,
    )

    @pl.when(k == pl.num_programs(2) - 1)
    def _():
        o_ref[...] = (acc_ref[...] + b_ref[...].astype(jnp.float32)).astype(o_ref.dtype)


def _tiled_forward(x, weight, bias, *, tm=256, tn=256, tk=512):
    B, D = x.shape
    O = weight.shape[0]

    # Clamp tiles to the (hardware-aligned) problem size so small problems do
    # not over-pad.  256/512 multiples match v6e/v7x MXU geometry; 128-aligned
    # remains legal on v5e.  Footprint (double-buffered inputs + out + acc)
    # is ~3 MiB at the defaults — safe under v7x's 32 MiB scoped VMEM.
    tm = min(tm, _round_up(B, 8))
    tn = min(tn, _round_up(O, 128))
    tk = min(tk, _round_up(D, 128))
    Bp, Op, Dp = _round_up(B, tm), _round_up(O, tn), _round_up(D, tk)

    xp = jnp.pad(x, ((0, Bp - B), (0, Dp - D))) if (Bp, Dp) != (B, D) else x
    wp = jnp.pad(weight, ((0, Op - O), (0, Dp - D))) if (Op, Dp) != (O, D) else weight
    bp = jnp.pad(bias, (0, Op - O)).reshape(1, Op)

    grid = (Bp // tm, Op // tn, Dp // tk)   # reduction (K) axis last

    out = pl.pallas_call(
        _linear_tiled_kernel,
        out_shape=jax.ShapeDtypeStruct((Bp, Op), x.dtype),
        grid_spec=pltpu.PrefetchScalarGridSpec(
            num_scalar_prefetch=0,
            grid=grid,
            in_specs=[
                pl.BlockSpec((tm, tk), lambda i, j, k: (i, k)),   # x tile
                pl.BlockSpec((tn, tk), lambda i, j, k: (j, k)),   # W tile (O, D layout)
                pl.BlockSpec((1, tn), lambda i, j, k: (0, j)),    # bias tile
            ],
            out_specs=pl.BlockSpec((tm, tn), lambda i, j, k: (i, j)),
            scratch_shapes=[pltpu.VMEM((tm, tn), jnp.float32)],   # f32 accumulator
        ),
        compiler_params=pltpu.CompilerParams(
            dimension_semantics=("parallel", "parallel", "arbitrary"),
            vmem_limit_bytes=32 * 1024 * 1024,
        ),
    )(xp, wp, bp)
    return out[:B, :O]


def simple_nn_forward(x, weight, bias):
    """x: [B, D], weight: [O, D] (PyTorch layout), bias: [O] -> [B, O]."""
    O, D = weight.shape
    if O == 1 and D <= 2048:
        # Degenerate matvec: MXU + a [B,1] masked store would be pure overhead.
        return _matvec_forward(x, weight, bias)
    return _tiled_forward(x, weight, bias)


if __name__ == "__main__":
    key = jax.random.PRNGKey(0)
    kx, kw, kb, kx2, kw2, kb2 = jax.random.split(key, 6)

    # --- Case 1: the module's own shapes (input_shape=32, output_shape=1). ---
    batch, in_features, out_features = 8, 32, 1
    bound = 1.0 / math.sqrt(in_features)
    weight = jax.random.uniform(kw, (out_features, in_features), jnp.float32, -bound, bound)
    bias = jax.random.uniform(kb, (out_features,), jnp.float32, -bound, bound)
    x = jax.random.normal(kx, (batch, in_features), jnp.float32)

    out = jax.block_until_ready(simple_nn_forward(x, weight, bias))
    ref = x @ weight.T + bias
    assert out.shape == (batch, out_features)
    assert jnp.allclose(out, ref, atol=1e-5, rtol=1e-5)

    # --- Case 2: exercise the tiled MXU path (small non-degenerate Linear). ---
    B2, D2, O2 = 16, 64, 8
    bound2 = 1.0 / math.sqrt(D2)
    w2 = jax.random.uniform(kw2, (O2, D2), jnp.float32, -bound2, bound2)
    b2 = jax.random.uniform(kb2, (O2,), jnp.float32, -bound2, bound2)
    x2 = jax.random.normal(kx2, (B2, D2), jnp.float32)

    out2 = jax.block_until_ready(simple_nn_forward(x2, w2, b2))
    ref2 = x2 @ w2.T + b2
    assert out2.shape == (B2, O2)
    assert jnp.allclose(out2, ref2, atol=1e-4, rtol=1e-4)

    print("KERNEL_OK")
</pallas_src>

<mosaic_0001>
module attributes {stable_mosaic.version = 11 : i64} {
  func.func @_matvec_kernel(%arg0: i32, %arg1: memref<32x128xf32, #tpu.memory_space<vmem>>, %arg2: memref<32x1xf32, #tpu.memory_space<vmem>>, %arg3: memref<1x1xf32, #tpu.memory_space<smem>>, %arg4: memref<1x128xf32, #tpu.memory_space<vmem>>) attributes {dimension_semantics = [#tpu.dimension_semantics<parallel>], iteration_bounds = array<i64: 1>, scalar_prefetch = 0 : i64, scratch_operands = 0 : i64, tpu.core_type = #tpu.core_type<tc>, window_params = [{transform_indices = @transform_0, window_bounds = array<i64: 32, 128>}, {pipeline_mode = #tpu.pipeline_mode<synchronous>, transform_indices = @transform_1, window_bounds = array<i64: 32, 1>}, {transform_indices = @transform_2, window_bounds = array<i64: 1, 1>}, {transform_indices = @transform_3, window_bounds = array<i64: 1, 128>}]} {
    %c0 = arith.constant 0 : index
    %c0_0 = arith.constant 0 : index
    %0 = vector.load %arg1[%c0, %c0_0] : memref<32x128xf32, #tpu.memory_space<vmem>>, vector<32x128xf32>
    %c0_1 = arith.constant 0 : index
    %c0_2 = arith.constant 0 : index
    %1 = vector.load %arg2[%c0_1, %c0_2] : memref<32x1xf32, #tpu.memory_space<vmem>>, vector<32x1xf32>
    %2 = vector.broadcast %1 : vector<32x1xf32> to vector<32x128xf32>
    %3 = arith.mulf %0, %2 : vector<32x128xf32>
    %cst = arith.constant dense<0.000000e+00> : vector<128xf32>
    %4 = vector.multi_reduction <add>, %3, %cst [0] : vector<32x128xf32> to vector<128xf32>
    %5 = vector.shape_cast %4 : vector<128xf32> to vector<1x128xf32>
    %c0_3 = arith.constant 0 : index
    %c0_4 = arith.constant 0 : index
    %6 = memref.load %arg3[%c0_3, %c0_4] : memref<1x1xf32, #tpu.memory_space<smem>>
    %7 = vector.broadcast %6 : f32 to vector<1x128xf32>
    %8 = arith.addf %5, %7 : vector<1x128xf32>
    %c0_5 = arith.constant 0 : index
    %c0_6 = arith.constant 0 : index
    %9 = vector.load %arg4[%c0_5, %c0_6] : memref<1x128xf32, #tpu.memory_space<vmem>>, vector<1x128xf32>
    tpu.vector_store %arg4[%c0_5, %c0_6], %8 {strides = array<i32>} : memref<1x128xf32, #tpu.memory_space<vmem>>, vector<1x128xf32>,
    return
  }
  func.func @transform_0(%arg0: i32) -> (i32, i32) {
    %c0_i32 = arith.constant 0 : i32
    %c0_i32_0 = arith.constant 0 : i32
    return %c0_i32, %arg0 : i32, i32
  }
  func.func @transform_1(%arg0: i32) -> (i32, i32) {
    %c0_i32 = arith.constant 0 : i32
    %c0_i32_0 = arith.constant 0 : i32
    %c0_i32_1 = arith.constant 0 : i32
    return %c0_i32, %c0_i32_0 : i32, i32
  }
  func.func @transform_2(%arg0: i32) -> (i32, i32) {
    %c0_i32 = arith.constant 0 : i32
    %c0_i32_0 = arith.constant 0 : i32
    %c0_i32_1 = arith.constant 0 : i32
    return %c0_i32, %c0_i32_0 : i32, i32
  }
  func.func @transform_3(%arg0: i32) -> (i32, i32) {
    %c0_i32 = arith.constant 0 : i32
    %c0_i32_0 = arith.constant 0 : i32
    return %c0_i32, %arg0 : i32, i32
  }
}

</mosaic_0001>

<llo_original>
// kernel: tpu_custom_call.1
$region0: #{tpu_custom_call.1}
  #allocation0 [shape = 'u32[]', space=smem, size = 0x4, offset = 0x4, fixed_abs, tag = 'smem constant byte address 0x4 - core index']
  #allocation1 [shape = 'u32[144,128]{1,0:T(1,128)}', space=vmem, size = 0x12000, scoped, tag = 'internal scratch']
  #allocation2 [shape = 'f32[1,1]{1,0:T(1,128)S(6)}', space=smem, size = 0x200, scoped, tag = 'scoped memory for tpu_custom_call.1']
  %s0 = inlined_call_operand.vmem [shape: f32[32,128], index: 0, kind: input, shape index: {}]
  %s1 = inlined_call_operand.vmem [shape: f32[32,1], index: 1, kind: input, shape index: {}]
  %s2 = inlined_call_operand.<no memory space> [shape: f32[1,1], index: 2, kind: input, shape index: {}]
  %s3 = inlined_call_operand.hbm [shape: f32[1,128], index: 3, kind: output, shape index: {}]
  %s4 = sld [smem:[#allocation0]]
  $region22: #{tpu_custom_call.1} parent=0
    _
  %s6 = ssub.s32 1, %s4
  %s7 = scalar_select 0, %s6, %s4
  %8 = sst [smem:[#allocation2]] %s2
  $region1: #{tpu_custom_call.1} parent=0
    #allocation3 [shape = 'u8[512]{0}', space=vmem, size = 0x400, scoped, tag = 'output window, operand 0, single buffered']
    #allocation4 [shape = 's32[1]{0}', space=sflag, size = 0x4, scoped, tag = 'scoped memory for tpu_custom_call.1']
    %9 = vsyncpa [#allocation4], 0
    // Predicated region
    $region2: #{tpu_custom_call.1} parent=1 // pred_check
      _
    $region3: #{tpu_custom_call.1} parent=1 // pred_check_branch
      %11 = sbr.rel (0) target = $region5
    $region4: #{tpu_custom_call.1} parent=1 // pred_region
      _
    $region5: #{tpu_custom_call.1} parent=1 // pred_fallthru
      _
    // Predicated region
    $region6: #{tpu_custom_call.1} parent=1 // pred_check
      _
    $region7: #{tpu_custom_call.1} parent=1 // pred_check_branch
      %13 = sbr.rel (0) target = $region9
    $region8: #{tpu_custom_call.1} parent=1 // pred_region
      _
    $region9: #{tpu_custom_call.1} parent=1 // pred_fallthru
      _
    // Predicated region
    $region10: #{tpu_custom_call.1} parent=1 // pred_check
      _
    $region11: #{tpu_custom_call.1} parent=1 // pred_check_branch
      %15 = sbr.rel (0) target = $region13
    $region12: #{tpu_custom_call.1} parent=1 // pred_region
      _
    $region13: #{tpu_custom_call.1} parent=1 // pred_fallthru
      _
    %v16 = vld [vmem:[%s0] sm:$0xff]
    %v17 = vld [vmem:[%s0 + $0x8] sm:$0xff]
    %v18 = vld [vmem:[%s0 + $0x10] sm:$0xff]
    %v19 = vld [vmem:[%s0 + $0x18] sm:$0xff]
    %v20 = vld [vmem:[%s1] sm:$0xff]
    %v21 = vld [vmem:[%s1 + $0x8] sm:$0xff]
    %v22 = vld [vmem:[%s1 + $0x10] sm:$0xff]
    %v23 = vld [vmem:[%s1 + $0x18] sm:$0xff]
    %25 = vset.pattern.permute.xlu0 0
    %26 = vperm.xlu0 %25, %v20
    %v27 = vpop.permute.xlu0 %26
    %30 = vset.pattern.permute.xlu0 0
    %31 = vperm.xlu0 %30, %v21
    %v32 = vpop.permute.xlu0 %31
    %35 = vset.pattern.permute.xlu0 0
    %36 = vperm.xlu0 %35, %v22
    %v37 = vpop.permute.xlu0 %36
    %40 = vset.pattern.permute.xlu0 0
    %41 = vperm.xlu0 %40, %v23
    %v42 = vpop.permute.xlu0 %41
    %v44 = vmul.f32 %v16, %v27
    %v45 = vmul.f32 %v17, %v32
    %v46 = vmul.f32 %v18, %v37
    %v47 = vmul.f32 %v19, %v42
    %v48 = vadd.f32 %v44, %v45
    %v49 = vadd.f32 %v48, %v46
    %v50 = vadd.f32 %v49, %v47
    %v51 = vrot.slane %v50, 4
    %v52 = vadd.f32 %v50, %v51
    %v53 = vrot.slane %v52, 2
    %v54 = vadd.f32 %v52, %v53
    %v55 = vrot.slane %v54, 1
    %v56 = vadd.f32 %v54, %v55
    %s57 = sld [smem:[#allocation2]]
    %v58 = vstv %s57
    %v59 = vadd.f32 %v56, %v58
    %60 = vst [vmem:[#allocation3] sm:$0x1] %v59
    // Predicated region
    $region14: #{tpu_custom_call.1} parent=1 // pred_check
      _
    $region15: #{tpu_custom_call.1} parent=1 // pred_check_branch
      %62 = sbr.rel (0) target = $region17
    $region16: #{tpu_custom_call.1} parent=1 // pred_region
      %s64 = ssub.s32 16, 16
      %65 = vsyncadd [#allocation4], %s64
      %s67 = sshll.u32 [#allocation3], 4
      %s68 = int_to_ptr.vmem [resolvable:$true] %s67
      %70 = dma.vmem_to_hbm [thread:$0]  %s68, 16, %s3, [#allocation4]
    $region17: #{tpu_custom_call.1} parent=1 // pred_fallthru
      _
    // Predicated region
    $region18: #{tpu_custom_call.1} parent=1 // pred_check
      _
    $region19: #{tpu_custom_call.1} parent=1 // pred_check_branch
      %72 = sbr.rel (0) target = $region21
    $region20: #{tpu_custom_call.1} parent=1 // pred_region
      %73 = dma.done [#allocation4], 16
    $region21: #{tpu_custom_call.1} parent=1 // pred_fallthru
      _
    %74 = vsyncpa [#allocation4], 1

</llo_original>
